<compile_context>
chip_gen: v5e
topology: v5e:2x2
jax: 0.10.0
libtpu: 0.0.40
codegen_flags: <defaults>
</compile_context>

<pallas_src>
import jax
import jax.numpy as jnp
from jax import lax
from jax.experimental import pallas as pl
from jax.experimental.pallas import tpu as pltpu


def _pixelnorm_kernel(x_ref, o_ref):
    # x_ref / o_ref: (blk, H, W) tile; rows are independent (n, c) slices.
    x = x_ref[...].astype(jnp.float32)
    ms = jnp.mean(x * x, axis=1, keepdims=True)            # reduce over H (torch dim=2)
    o_ref[...] = (x * lax.rsqrt(ms + 1e-8)).astype(o_ref.dtype)


def _pick_block_rows(nc, row_bytes, vmem_block_budget=4 * 1024 * 1024, min_steps=2):
    """Largest rows-per-step such that:
       - double-buffered in+out footprint (~4 * blk * row_bytes) stays within a
         conservative budget valid on every TPU generation (incl. v7x 64 MiB VMEM),
       - we keep >= min_steps grid steps when possible (v7x has 2 TensorCores),
       - blk divides nc so every block is full (no ragged masking)."""
    cap = max(1, vmem_block_budget // row_bytes)
    blk = min(nc, cap)
    if nc >= min_steps:
        blk = min(blk, pl.cdiv(nc, min_steps))
    while nc % blk:
        blk -= 1
    return blk


def pixel_norm(x):
    """PixelNorm over dim=2 of an NCHW tensor, computed in a Pallas kernel."""
    N, C, H, W = x.shape
    nc = N * C
    x2 = x.reshape(nc, H, W)                      # free reshape (row-major contiguous)

    # Budget f32 per element even for narrow input dtypes (in-kernel f32 upcast).
    row_bytes = H * W * max(jnp.dtype(x.dtype).itemsize, 4)
    blk = _pick_block_rows(nc, row_bytes)
    grid = (nc // blk,)

    out = pl.pallas_call(
        _pixelnorm_kernel,
        out_shape=jax.ShapeDtypeStruct((nc, H, W), x.dtype),
        grid=grid,
        in_specs=[pl.BlockSpec((blk, H, W), lambda i: (i, 0, 0))],
        out_specs=pl.BlockSpec((blk, H, W), lambda i: (i, 0, 0)),
        compiler_params=pltpu.CompilerParams(
            dimension_semantics=("parallel",)),
    )(x2)
    return out.reshape(N, C, H, W)


if __name__ == "__main__":
    key = jax.random.PRNGKey(0)
    x = jax.random.normal(key, (2, 4, 16, 16), dtype=jnp.float32)

    out = pixel_norm(x)
    jax.block_until_ready(out)

    # Pure-JAX reference (matches the PyTorch module: reduce over dim=2).
    ref = x * lax.rsqrt(jnp.mean(x ** 2, axis=2, keepdims=True) + 1e-8)
    assert out.shape == x.shape and out.dtype == x.dtype
    assert jnp.allclose(out, ref, atol=1e-5, rtol=1e-5)

    print("KERNEL_OK")
</pallas_src>

<mosaic_0001>
module attributes {stable_mosaic.version = 11 : i64} {
  func.func @_pixelnorm_kernel(%arg0: i32, %arg1: memref<4x16x16xf32, #tpu.memory_space<vmem>>, %arg2: memref<4x16x16xf32, #tpu.memory_space<vmem>>) attributes {dimension_semantics = [#tpu.dimension_semantics<parallel>], iteration_bounds = array<i64: 2>, scalar_prefetch = 0 : i64, scratch_operands = 0 : i64, tpu.core_type = #tpu.core_type<tc>, window_params = [{transform_indices = @transform_0, window_bounds = array<i64: 4, 16, 16>}, {transform_indices = @transform_1, window_bounds = array<i64: 4, 16, 16>}]} {
    %c0 = arith.constant 0 : index
    %c0_0 = arith.constant 0 : index
    %c0_1 = arith.constant 0 : index
    %0 = vector.load %arg1[%c0, %c0_0, %c0_1] : memref<4x16x16xf32, #tpu.memory_space<vmem>>, vector<4x16x16xf32>
    %1 = arith.mulf %0, %0 : vector<4x16x16xf32>
    %cst = arith.constant dense<0.000000e+00> : vector<4x16xf32>
    %2 = vector.multi_reduction <add>, %1, %cst [1] : vector<4x16x16xf32> to vector<4x16xf32>
    %3 = vector.shape_cast %2 : vector<4x16xf32> to vector<4x1x16xf32>
    %cst_2 = arith.constant 1.600000e+01 : f32
    %4 = vector.broadcast %cst_2 : f32 to vector<4x1x16xf32>
    %5 = arith.divf %3, %4 : vector<4x1x16xf32>
    %cst_3 = arith.constant 9.99999993E-9 : f32
    %6 = vector.broadcast %cst_3 : f32 to vector<4x1x16xf32>
    %7 = arith.addf %5, %6 : vector<4x1x16xf32>
    %8 = math.rsqrt %7 : vector<4x1x16xf32>
    %9 = vector.broadcast %8 : vector<4x1x16xf32> to vector<4x16x16xf32>
    %10 = arith.mulf %0, %9 : vector<4x16x16xf32>
    %c0_4 = arith.constant 0 : index
    %c0_5 = arith.constant 0 : index
    %c0_6 = arith.constant 0 : index
    %11 = vector.load %arg2[%c0_4, %c0_5, %c0_6] : memref<4x16x16xf32, #tpu.memory_space<vmem>>, vector<4x16x16xf32>
    tpu.vector_store %arg2[%c0_4, %c0_5, %c0_6], %10 {strides = array<i32>} : memref<4x16x16xf32, #tpu.memory_space<vmem>>, vector<4x16x16xf32>,
    return
  }
  func.func @transform_0(%arg0: i32) -> (i32, i32, i32) {
    %c0_i32 = arith.constant 0 : i32
    %c0_i32_0 = arith.constant 0 : i32
    %c0_i32_1 = arith.constant 0 : i32
    return %arg0, %c0_i32, %c0_i32_0 : i32, i32, i32
  }
  func.func @transform_1(%arg0: i32) -> (i32, i32, i32) {
    %c0_i32 = arith.constant 0 : i32
    %c0_i32_0 = arith.constant 0 : i32
    %c0_i32_1 = arith.constant 0 : i32
    return %arg0, %c0_i32, %c0_i32_0 : i32, i32, i32
  }
}

</mosaic_0001>

<llo_original>
// kernel: tpu_custom_call.1
$region0: #{tpu_custom_call.1}
  #allocation0 [shape = 'u32[]', space=smem, size = 0x4, offset = 0x4, fixed_abs, tag = 'smem constant byte address 0x4 - core index']
  #allocation1 [shape = 'u32[72,128]{1,0:T(1,128)}', space=vmem, size = 0x9000, scoped, tag = 'internal scratch']
  %s0 = inlined_call_operand.hbm [shape: f32[8,16,16], index: 0, kind: input, shape index: {}]
  %s1 = inlined_call_operand.hbm [shape: f32[8,16,16], index: 1, kind: output, shape index: {}]
  %s2 = sld [smem:[#allocation0]]
  $region41: #{tpu_custom_call.1} parent=0
    _
  %s4 = ssub.s32 1, %s2
  %s5 = scalar_select 0, %s4, %s2
  $region1: #{tpu_custom_call.1} parent=0
    #allocation2 [shape = 'u8[65536]{0}', space=vmem, size = 0x10000, scoped, tag = 'input window, operand 0']
    #allocation3 [shape = 's32[2]{0}', space=sflag, size = 0x8, scoped, tag = 'scoped memory for tpu_custom_call.1']
    #allocation4 [shape = 's32[2]{0}', space=sflag, size = 0x8, scoped, tag = 'scoped memory for tpu_custom_call.1']
    #allocation5 [shape = 'u8[65536]{0}', space=vmem, size = 0x10000, scoped, tag = 'output window, operand 0']
    %6 = vsyncpa [#allocation3], 0
    %s7 = scalar_lea.sflag [#allocation3], 1
    %8 = vsyncpa %s7, 0
    %9 = vsyncpa [#allocation4], 0
    %s10 = scalar_lea.sflag [#allocation4], 1
    %11 = vsyncpa %s10, 0
    loop: start=0, step=1, limit=4
    $region2: #{tpu_custom_call.1} parent=1 // loop_pre_header
      _
    $region3: #{tpu_custom_call.1} parent=1 // loop_header
      %s13 = sphi 0, %s17
      %p14 = scmp.ge.s32.totalorder %s13, 4
      %s23 = sphi 0, %s25
      %s26 = sphi 0, %s23
      %s27 = sphi 0, %s26
      %s43 = sphi 0, %s27
      %s49 = sphi 0, %s51
      %s52 = sphi 0, %s49
      %s53 = sphi 0, %s52
      %s69 = sphi 0, %s53
    $region4: #{tpu_custom_call.1} parent=1 // loop_header_branch
      %16 = sbr.rel (%p14) target = $region8
    $region5: #{tpu_custom_call.1} parent=1 // loop_body
      %s18 = ssub.s32 %s13, 1
      %s19 = ssub.s32 %s13, 2
      %s20 = sadd.s32 %s13, 1
      %s21 = ssub.s32 %s13, %s20
      %p22 = scmp.eq.s32.totalorder %s21, 0
      %s24 = sadd.s32 %s23, 1
      %s25 = scalar_select %p22, %s23, %s24
      %p28 = pneg %p22
      %p29 = scmp.eq.s32.totalorder %s13, 1
      %p30 = por %p28, %p29
      %p31 = scmp.ne.s32.totalorder %s23, %s26
      %p32 = scmp.eq.s32.totalorder %s13, 0
      %p33 = por %p31, %p32
      %p34 = scmp.ne.s32.totalorder %s23, %s26
      %p35 = scmp.eq.s32.totalorder %s18, 1
      %p36 = por %p34, %p35
      %p37 = scmp.ne.s32.totalorder %s26, %s27
      %p38 = scmp.eq.s32.totalorder %s18, 0
      %p39 = por %p37, %p38
      %p40 = scmp.ne.s32.totalorder %s26, %s27
      %p41 = scmp.eq.s32.totalorder %s19, 1
      %p42 = por %p40, %p41
      %p44 = scmp.ne.s32.totalorder %s27, %s43
      %p45 = scmp.eq.s32.totalorder %s19, 0
      %p46 = por %p44, %p45
      %s47 = ssub.s32 %s13, %s20
      %p48 = scmp.eq.s32.totalorder %s47, 0
      %s50 = sadd.s32 %s49, 1
      %s51 = scalar_select %p48, %s49, %s50
      %p54 = pneg %p48
      %p55 = scmp.eq.s32.totalorder %s13, 1
      %p56 = por %p54, %p55
      %p57 = scmp.ne.s32.totalorder %s49, %s52
      %p58 = scmp.eq.s32.totalorder %s13, 0
      %p59 = por %p57, %p58
      %p60 = scmp.ne.s32.totalorder %s49, %s52
      %p61 = scmp.eq.s32.totalorder %s18, 1
      %p62 = por %p60, %p61
      %p63 = scmp.ne.s32.totalorder %s52, %s53
      %p64 = scmp.eq.s32.totalorder %s18, 0
      %p65 = por %p63, %p64
      %p66 = scmp.ne.s32.totalorder %s52, %s53
      %p67 = scmp.eq.s32.totalorder %s19, 1
      %p68 = por %p66, %p67
      %p70 = scmp.ne.s32.totalorder %s53, %s69
      %p71 = scmp.eq.s32.totalorder %s19, 0
      %p72 = por %p70, %p71
      %p73 = scmp.le.s32.totalorder 1, %s13
      %p74 = scmp.lt.s32.totalorder %s13, 3
      %p75 = pnand %p73, %p74
      %p76 = pneg %p75
      // Predicated region
      $region9: #{tpu_custom_call.1} parent=5 // pred_check
        _
      $region10: #{tpu_custom_call.1} parent=5 // pred_check_branch
        %78 = sbr.rel (%p75) target = $region12
      $region11: #{tpu_custom_call.1} parent=5 // pred_region
        %s79 = ssub.s32 %s13, 1
      $region12: #{tpu_custom_call.1} parent=5 // pred_fallthru
        _
      %p80 = scmp.lt.s32.totalorder %s13, 2
      // Predicated region
      $region13: #{tpu_custom_call.1} parent=5 // pred_check
        %p81 = pneg %p80
      $region14: #{tpu_custom_call.1} parent=5 // pred_check_branch
        %83 = sbr.rel (%p81) target = $region16
      $region15: #{tpu_custom_call.1} parent=5 // pred_region
        // Predicated region
        $region17: #{tpu_custom_call.1} parent=15 // pred_check
          %p84 = pneg %p33
        $region18: #{tpu_custom_call.1} parent=15 // pred_check_branch
          %86 = sbr.rel (%p84) target = $region20
        $region19: #{tpu_custom_call.1} parent=15 // pred_region
          %s87 = sand.u32 %s23, 1
          %s88 = scalar_lea.sflag [#allocation3], %s87
          %s89 = sand.u32 %s23, 1
          %s90 = smul.addr %s89, 64
          %s91 = scalar_lea.vmem [#allocation2], %s90
          %s92 = smul.u32 4, %s13
          %94 = vsyncadd %s88, 0
          %s95 = smul.addr %s92, 2
          %s96 = smul.addr %s95, 8
          %s97 = scalar_lea.hbm %s0, %s96
          %s98 = sshll.u32 %s97, 4
          %s99 = int_to_ptr.hbm [resolvable:$true] %s98
          %s100 = sshll.u32 %s91, 4
          %s101 = int_to_ptr.vmem [resolvable:$true] %s100
          %106 = dma.hbm_to_vmem [thread:$0]  %s99, 1024, %s101, %s88, 128, 128, 8
        $region20: #{tpu_custom_call.1} parent=15 // pred_fallthru
          _
      $region16: #{tpu_custom_call.1} parent=5 // pred_fallthru
        _
      %p107 = scmp.le.s32.totalorder 1, %s13
      %p108 = scmp.lt.s32.totalorder %s13, 3
      %p109 = pnand %p107, %p108
      %p110 = pneg %p109
      // Predicated region
      $region21: #{tpu_custom_call.1} parent=5 // pred_check
        _
      $region22: #{tpu_custom_call.1} parent=5 // pred_check_branch
        %112 = sbr.rel (%p109) target = $region24
      $region23: #{tpu_custom_call.1} parent=5 // pred_region
        %s113 = ssub.s32 %s13, 1
        %s114 = sand.u32 %s26, 1
        %s115 = scalar_lea.sflag [#allocation3], %s114
        %s116 = sand.u32 %s26, 1
        %s117 = smul.addr %s116, 64
        %s118 = scalar_lea.vmem [#allocation2], %s117
        // Predicated region
        $region25: #{tpu_custom_call.1} parent=23 // pred_check
          %p119 = pneg %p39
        $region26: #{tpu_custom_call.1} parent=23 // pred_check_branch
          %121 = sbr.rel (%p119) target = $region28
        $region27: #{tpu_custom_call.1} parent=23 // pred_region
          %123 = dma.done %s115, 1024
        $region28: #{tpu_custom_call.1} parent=23 // pred_fallthru
          _
        %s124 = sand.u32 %s26, 1
        %s125 = scalar_lea.sflag [#allocation3], %s124
        %s126 = sand.u32 %s26, 1
        %s127 = smul.addr %s126, 64
        %s128 = scalar_lea.vmem [#allocation2], %s127
        %p129 = pneg %p39
        %p130 = pneg %p36
        %p131 = pneg %p65
        %p132 = pneg %p62
        %s133 = sand.u32 %s52, 1
        %s134 = scalar_lea.sflag [#allocation4], %s133
        %s135 = sand.u32 %s52, 1
        %s136 = smul.addr %s135, 64
        %s137 = scalar_lea.vmem [#allocation5], %s136
        %s138 = smul.u32 4, %s18
        %s139 = smul.u32 4, %s18
        %v140 = vld [vmem:[%s118] sm:$0xff]
        %v141 = vld [vmem:[%s118 + $0x8] sm:$0xff]
        %v142 = vld [vmem:[%s118 + $0x10] sm:$0xff]
        %v143 = vld [vmem:[%s118 + $0x18] sm:$0xff]
        %v144 = vld [vmem:[%s118 + $0x20] sm:$0xff]
        %v145 = vld [vmem:[%s118 + $0x28] sm:$0xff]
        %v146 = vld [vmem:[%s118 + $0x30] sm:$0xff]
        %v147 = vld [vmem:[%s118 + $0x38] sm:$0xff]
        %v148 = vmul.f32 %v140, %v140
        %v149 = vmul.f32 %v141, %v141
        %v150 = vmul.f32 %v142, %v142
        %v151 = vmul.f32 %v143, %v143
        %v152 = vmul.f32 %v144, %v144
        %v153 = vmul.f32 %v145, %v145
        %v154 = vmul.f32 %v146, %v146
        %v155 = vmul.f32 %v147, %v147
        %vm156 = vcmask 130048
        %v157 = vsel %vm156, %v148, 0.0
        %v158 = vsel %vm156, %v149, 0.0
        %v159 = vadd.f32 %v157, %v158
        %v160 = vrot.slane %v159, 4
        %v161 = vadd.f32 %v159, %v160
        %v162 = vrot.slane %v161, 2
        %v163 = vadd.f32 %v161, %v162
        %v164 = vrot.slane %v163, 1
        %v165 = vadd.f32 %v163, %v164
        %v166 = vsel %vm156, %v150, 0.0
        %v167 = vsel %vm156, %v151, 0.0
        %v168 = vadd.f32 %v166, %v167
        %v169 = vrot.slane %v168, 4
        %v170 = vadd.f32 %v168, %v169
        %v171 = vrot.slane %v170, 2
        %v172 = vadd.f32 %v170, %v171
        %v173 = vrot.slane %v172, 1
        %v174 = vadd.f32 %v172, %v173
        %v175 = vsel %vm156, %v152, 0.0
        %v176 = vsel %vm156, %v153, 0.0
        %v177 = vadd.f32 %v175, %v176
        %v178 = vrot.slane %v177, 4
        %v179 = vadd.f32 %v177, %v178
        %v180 = vrot.slane %v179, 2
        %v181 = vadd.f32 %v179, %v180
        %v182 = vrot.slane %v181, 1
        %v183 = vadd.f32 %v181, %v182
        %v184 = vsel %vm156, %v154, 0.0
        %v185 = vsel %vm156, %v155, 0.0
        %v186 = vadd.f32 %v184, %v185
        %v187 = vrot.slane %v186, 4
        %v188 = vadd.f32 %v186, %v187
        %v189 = vrot.slane %v188, 2
        %v190 = vadd.f32 %v188, %v189
        %v191 = vrot.slane %v190, 1
        %v192 = vadd.f32 %v190, %v191
        %v193 = vrcp.pop 16.0
        %v194 = vmul.f32 16.0, %v193
        %v195 = vsub.f32 1.0, %v194
        %v196 = vmul.f32 %v193, %v195
        %v197 = vadd.f32 %v193, %v196
        %vm198 = vweird.f32 %v193
        %v199 = vsel %vm198, %v193, %v197
        %v200 = vmul.f32 %v165, %v199
        %v201 = vmul.f32 %v174, %v199
        %v202 = vmul.f32 %v183, %v199
        %v203 = vmul.f32 %v192, %v199
        %v204 = vadd.f32 %v200, 1e-08
        %v205 = vadd.f32 %v201, 1e-08
        %v206 = vadd.f32 %v202, 1e-08
        %v207 = vadd.f32 %v203, 1e-08
        %v208 = vrsqrt.pop %v204
        %v209 = vmul.f32 %v208, %v204
        %v210 = vmul.f32 %v209, %v208
        %v211 = vmul.f32 0.5, %v210
        %v212 = vsub.f32 1.5, %v211
        %v213 = vmul.f32 %v208, %v212
        %vm214 = vweird.f32 %v204
        %vm215 = vweird.f32 %v208
        %vm216 = vmor %vm214, %vm215
        %v217 = vsel %vm216, %v208, %v213
        %v218 = vrsqrt.pop %v205
        %v219 = vmul.f32 %v218, %v205
        %v220 = vmul.f32 %v219, %v218
        %v221 = vmul.f32 0.5, %v220
        %v222 = vsub.f32 1.5, %v221
        %v223 = vmul.f32 %v218, %v222
        %vm224 = vweird.f32 %v205
        %vm225 = vweird.f32 %v218
        %vm226 = vmor %vm224, %vm225
        %v227 = vsel %vm226, %v218, %v223
        %v228 = vrsqrt.pop %v206
        %v229 = vmul.f32 %v228, %v206
        %v230 = vmul.f32 %v229, %v228
        %v231 = vmul.f32 0.5, %v230
        %v232 = vsub.f32 1.5, %v231
        %v233 = vmul.f32 %v228, %v232
        %vm234 = vweird.f32 %v206
        %vm235 = vweird.f32 %v228
        %vm236 = vmor %vm234, %vm235
        %v237 = vsel %vm236, %v228, %v233
        %v238 = vrsqrt.pop %v207
        %v239 = vmul.f32 %v238, %v207
        %v240 = vmul.f32 %v239, %v238
        %v241 = vmul.f32 0.5, %v240
        %v242 = vsub.f32 1.5, %v241
        %v243 = vmul.f32 %v238, %v242
        %vm244 = vweird.f32 %v207
        %vm245 = vweird.f32 %v238
        %vm246 = vmor %vm244, %vm245
        %v247 = vsel %vm246, %v238, %v243
        %v248 = vmul.f32 %v140, %v217
        %v249 = vmul.f32 %v141, %v217
        %v250 = vmul.f32 %v142, %v227
        %v251 = vmul.f32 %v143, %v227
        %v252 = vmul.f32 %v144, %v237
        %v253 = vmul.f32 %v145, %v237
        %v254 = vmul.f32 %v146, %v247
        %v255 = vmul.f32 %v147, %v247
        %256 = vst.msk [vmem:[%s137] sm:$0xff] %vm156, %v248
        %257 = vst.msk [vmem:[%s137 + $0x8] sm:$0xff] %vm156, %v249
        %258 = vst.msk [vmem:[%s137 + $0x10] sm:$0xff] %vm156, %v250
        %259 = vst.msk [vmem:[%s137 + $0x18] sm:$0xff] %vm156, %v251
        %260 = vst.msk [vmem:[%s137 + $0x20] sm:$0xff] %vm156, %v252
        %261 = vst.msk [vmem:[%s137 + $0x28] sm:$0xff] %vm156, %v253
        %262 = vst.msk [vmem:[%s137 + $0x30] sm:$0xff] %vm156, %v254
        %263 = vst.msk [vmem:[%s137 + $0x38] sm:$0xff] %vm156, %v255
        %s264 = sand.u32 %s52, 1
        %s265 = scalar_lea.sflag [#allocation4], %s264
        %s266 = sand.u32 %s52, 1
        %s267 = smul.addr %s266, 64
        %s268 = scalar_lea.vmem [#allocation5], %s267
        // Predicated region
        $region29: #{tpu_custom_call.1} parent=23 // pred_check
          %p269 = pneg %p62
        $region30: #{tpu_custom_call.1} parent=23 // pred_check_branch
          %271 = sbr.rel (%p269) target = $region32
        $region31: #{tpu_custom_call.1} parent=23 // pred_region
          %s272 = smul.u32 4, %s18
          %274 = vsyncadd %s265, 0
          %s275 = smul.addr %s272, 2
          %s276 = smul.addr %s275, 8
          %s277 = scalar_lea.hbm %s1, %s276
          %s278 = sshll.u32 %s268, 4
          %s279 = int_to_ptr.vmem [resolvable:$true] %s278
          %s280 = sshll.u32 %s277, 4
          %s281 = int_to_ptr.hbm [resolvable:$true] %s280
          %286 = dma.vmem_to_hbm [thread:$0]  %s279, 1024, %s281, %s265, 128, 128, 8
        $region32: #{tpu_custom_call.1} parent=23 // pred_fallthru
          _
      $region24: #{tpu_custom_call.1} parent=5 // pred_fallthru
        _
      %p287 = scmp.le.s32.totalorder 2, %s13
      // Predicated region
      $region33: #{tpu_custom_call.1} parent=5 // pred_check
        %p288 = pneg %p287
      $region34: #{tpu_custom_call.1} parent=5 // pred_check_branch
        %290 = sbr.rel (%p288) target = $region36
      $region35: #{tpu_custom_call.1} parent=5 // pred_region
        %s291 = ssub.s32 %s13, 2
        // Predicated region
        $region37: #{tpu_custom_call.1} parent=35 // pred_check
          %p292 = pneg %p68
        $region38: #{tpu_custom_call.1} parent=35 // pred_check_branch
          %294 = sbr.rel (%p292) target = $region40
        $region39: #{tpu_custom_call.1} parent=35 // pred_region
          %s295 = sand.u32 %s53, 1
          %s296 = scalar_lea.sflag [#allocation4], %s295
          %s297 = sand.u32 %s53, 1
          %s298 = smul.addr %s297, 64
          %s299 = scalar_lea.vmem [#allocation5], %s298
          %301 = dma.done %s296, 1024
        $region40: #{tpu_custom_call.1} parent=35 // pred_fallthru
          _
      $region36: #{tpu_custom_call.1} parent=5 // pred_fallthru
        _
    $region6: #{tpu_custom_call.1} parent=1 // loop_footer
      %s17 = sadd.s32 1, %s13
    $region7: #{tpu_custom_call.1} parent=1 // loop_footer_branch
      %12 = sbr.rel target = $region3
    $region8: #{tpu_custom_call.1} parent=1 // loop_exit
      _
    %302 = vsyncpa [#allocation3], 1
    %s303 = scalar_lea.sflag [#allocation3], 1
    %304 = vsyncpa %s303, 1
    %305 = vsyncpa [#allocation4], 1
    %s306 = scalar_lea.sflag [#allocation4], 1
    %307 = vsyncpa %s306, 1

</llo_original>
